<compile_context>
chip_gen: v7x
topology: tpu7x:2x2x1
jax: 0.10.0
libtpu: 0.0.40
codegen_flags: <defaults>
</compile_context>

<pallas_src>
import jax
import jax.numpy as jnp
from jax.experimental import pallas as pl
from jax.experimental.pallas import tpu as pltpu


def _round_up(x: int, m: int) -> int:
    return (x + m - 1) // m * m


def mlp_kernel(x_ref, w1_ref, b1_ref, w2_ref, b2_ref, o_ref):
    # Layer 1: [TB, In] @ [In, Hid] -> [TB, Hid], f32 MXU accumulation.
    h = jnp.dot(x_ref[...], w1_ref[...], preferred_element_type=jnp.float32)
    # Bias + ReLU in f32 on the VPU.
    h = jnp.maximum(h + b1_ref[...], 0.0)
    # Layer 2: [TB, Hid] (bf16) @ [Hid, OutPad] -> [TB, OutPad], f32 acc.
    y = jnp.dot(h.astype(w2_ref.dtype), w2_ref[...],
                preferred_element_type=jnp.float32)
    o_ref[...] = (y + b2_ref[...]).astype(o_ref.dtype)


@jax.jit
def mlp_forward(x, w1, b1, w2, b2):
    """x: [B, In]; w1: [Hid, In]; b1: [Hid]; w2: [Out, Hid]; b2: [Out]
    (PyTorch nn.Linear parameter conventions). Returns [B, Out] in x.dtype."""
    B, In = x.shape
    Hid = w1.shape[0]
    Out = w2.shape[0]
    out_dtype = x.dtype
    out_bytes = jnp.dtype(out_dtype).itemsize

    # ---- layout / dtype prep (cheap, fused by XLA under jit) --------------
    # bf16 MXU inputs; weights pre-transposed to [K, N] layout.
    x_b = x.astype(jnp.bfloat16)
    w1_t = w1.T.astype(jnp.bfloat16)                  # [In, Hid]
    w2_t = w2.T.astype(jnp.bfloat16)                  # [Hid, Out]
    b1_2d = b1.reshape(1, Hid).astype(jnp.float32)
    b2_f32 = b2.astype(jnp.float32)

    # Output-feature padding: pad to a lane-dense multiple of 128 only when
    # Out is >= 128 and misaligned. For tiny Out (< 128) a masked store is
    # cheaper than an 8x-wider padded slab plus a wrapper slice pass.
    if Out % 128 == 0 or Out < 128:
        OutPad = Out
        w2_p = w2_t
        b2_p = b2_f32.reshape(1, Out)
    else:
        OutPad = _round_up(Out, 128)
        w2_p = jnp.zeros((Hid, OutPad), jnp.bfloat16).at[:, :Out].set(w2_t)
        b2_p = jnp.zeros((1, OutPad), jnp.float32).at[0, :Out].set(b2_f32)

    # ---- batch tile sizing against an explicit per-step VMEM budget -------
    weight_bytes = (In * Hid + Hid * OutPad) * 2 + (Hid + OutPad) * 4
    # Per batch row: double-buffered bf16 x, double-buffered output, f32 h.
    per_row = 2 * In * 2 + 2 * OutPad * out_bytes + Hid * 4
    budget = 12 * 1024 * 1024                 # fits every gen's scoped default
    avail = max(budget - 2 * weight_bytes, per_row * 8)
    tb_cap = max(8, min(2048, (avail // per_row) // 8 * 8))

    B8 = _round_up(B, 8)
    tiles = pl.cdiv(B8, tb_cap)
    if B8 >= 16:
        tiles = max(tiles, 2)   # >=2 grid steps so v7x can shard across TCs
    TB = _round_up(pl.cdiv(B8, tiles), 8)
    B_pad = _round_up(B8, TB)

    # Guarded batch padding (padded rows evaluate to relu(b1)@W2^T+b2 — they
    # are garbage and must only ever be removed by the [:B] slice below).
    if B_pad != B:
        x_p = jnp.zeros((B_pad, In), jnp.bfloat16).at[:B, :].set(x_b)
    else:
        x_p = x_b

    grid = (B_pad // TB,)

    step_bytes = (2 * (TB * In * 2 + TB * OutPad * out_bytes)
                  + 2 * weight_bytes + TB * Hid * 4)
    vmem_limit = int(min(max(step_bytes + (4 << 20), 32 << 20), 64 << 20))

    cost = pl.CostEstimate(
        flops=2 * B_pad * In * Hid + 2 * B_pad * Hid * OutPad,
        transcendentals=0,
        bytes_accessed=(B_pad * In * 2 + In * Hid * 2 + Hid * 4
                        + Hid * OutPad * 2 + OutPad * 4
                        + B_pad * OutPad * out_bytes),
    )

    out_pad = pl.pallas_call(
        mlp_kernel,
        out_shape=jax.ShapeDtypeStruct((B_pad, OutPad), out_dtype),
        grid_spec=pltpu.PrefetchScalarGridSpec(
            num_scalar_prefetch=0,
            grid=grid,
            in_specs=[
                # Activations: advance along the batch grid axis.
                pl.BlockSpec((TB, In), lambda i: (i, 0)),
                # Weights / biases: constant index_maps, single-buffered VMEM
                # residents (no pointless double-buffering of invariants).
                pl.BlockSpec((In, Hid), lambda i: (0, 0),
                             pipeline_mode=pl.Buffered(1)),
                pl.BlockSpec((1, Hid), lambda i: (0, 0),
                             pipeline_mode=pl.Buffered(1)),
                pl.BlockSpec((Hid, OutPad), lambda i: (0, 0),
                             pipeline_mode=pl.Buffered(1)),
                pl.BlockSpec((1, OutPad), lambda i: (0, 0),
                             pipeline_mode=pl.Buffered(1)),
            ],
            out_specs=pl.BlockSpec((TB, OutPad), lambda i: (i, 0)),
        ),
        compiler_params=pltpu.CompilerParams(
            dimension_semantics=("parallel",),   # shard batch across TCs (v7x)
            vmem_limit_bytes=vmem_limit,
        ),
        cost_estimate=cost,
    )(x_p, w1_t, b1_2d, w2_p, b2_p)

    if B_pad != B or OutPad != Out:
        out_pad = out_pad[:B, :Out]
    return out_pad


if __name__ == "__main__":
    # Small shapes consistent with the module's forward.
    batch, input_size, hidden_size, output_size = 8, 32, 64, 16

    key = jax.random.PRNGKey(0)
    kx, kw1, kb1, kw2, kb2 = jax.random.split(key, 5)

    x = jax.random.normal(kx, (batch, input_size), dtype=jnp.float32)
    # PyTorch nn.Linear parameter shapes: W [out, in], b [out].
    w1 = jax.random.normal(kw1, (hidden_size, input_size), dtype=jnp.float32) * 0.1
    b1 = jax.random.normal(kb1, (hidden_size,), dtype=jnp.float32) * 0.1
    w2 = jax.random.normal(kw2, (output_size, hidden_size), dtype=jnp.float32) * 0.1
    b2 = jax.random.normal(kb2, (output_size,), dtype=jnp.float32) * 0.1

    y = mlp_forward(x, w1, b1, w2, b2)
    y = jax.block_until_ready(y)
    assert y.shape == (batch, output_size)
    assert y.dtype == x.dtype

    # Reference 1: same math as the kernel (bf16 MXU inputs, f32 accumulation).
    xb, w1b, w2b = (a.astype(jnp.bfloat16) for a in (x, w1, w2))
    h_ref = jnp.maximum(
        jnp.dot(xb, w1b.T, preferred_element_type=jnp.float32) + b1, 0.0)
    y_ref_bf16 = jnp.dot(h_ref.astype(jnp.bfloat16), w2b.T,
                         preferred_element_type=jnp.float32) + b2
    assert jnp.allclose(y, y_ref_bf16, atol=1e-3, rtol=1e-3)

    # Reference 2: pure f32 PyTorch-equivalent math (loose tol: h is cast to
    # bf16 before the second matmul, a second precision loss vs f32 Linear).
    y_ref_f32 = jnp.maximum(x @ w1.T + b1, 0.0) @ w2.T + b2
    assert jnp.allclose(y, y_ref_f32, atol=5e-2, rtol=5e-2)

    print("KERNEL_OK")
</pallas_src>

<mosaic_0001>
module attributes {stable_mosaic.version = 11 : i64} {
  func.func @mlp_kernel(%arg0: i32, %arg1: memref<8x32xbf16, #tpu.memory_space<vmem>>, %arg2: memref<32x64xbf16, #tpu.memory_space<vmem>>, %arg3: memref<1x64xf32, #tpu.memory_space<vmem>>, %arg4: memref<64x16xbf16, #tpu.memory_space<vmem>>, %arg5: memref<1x16xf32, #tpu.memory_space<vmem>>, %arg6: memref<8x16xf32, #tpu.memory_space<vmem>>) attributes {dimension_semantics = [#tpu.dimension_semantics<parallel>], iteration_bounds = array<i64: 1>, scalar_prefetch = 0 : i64, scratch_operands = 0 : i64, tpu.core_type = #tpu.core_type<tc>, window_params = [{transform_indices = @transform_0, window_bounds = array<i64: 8, 32>}, {pipeline_mode = #tpu.pipeline_mode<synchronous>, transform_indices = @transform_1, window_bounds = array<i64: 32, 64>}, {pipeline_mode = #tpu.pipeline_mode<synchronous>, transform_indices = @transform_2, window_bounds = array<i64: 1, 64>}, {pipeline_mode = #tpu.pipeline_mode<synchronous>, transform_indices = @transform_3, window_bounds = array<i64: 64, 16>}, {pipeline_mode = #tpu.pipeline_mode<synchronous>, transform_indices = @transform_4, window_bounds = array<i64: 1, 16>}, {transform_indices = @transform_5, window_bounds = array<i64: 8, 16>}]} {
    %c0 = arith.constant 0 : index
    %c0_0 = arith.constant 0 : index
    %0 = vector.load %arg1[%c0, %c0_0] : memref<8x32xbf16, #tpu.memory_space<vmem>>, vector<8x32xbf16>
    %c0_1 = arith.constant 0 : index
    %c0_2 = arith.constant 0 : index
    %1 = vector.load %arg2[%c0_1, %c0_2] : memref<32x64xbf16, #tpu.memory_space<vmem>>, vector<32x64xbf16>
    %cst = arith.constant dense<0.000000e+00> : vector<8x64xf32>
    %2 = tpu.matmul %0, %1, %cst {dimension_numbers = #tpu.dot_dimension_numbers<[1], [0], [0], [1], [0, 0, 1, 1], [], []>} : vector<8x32xbf16>, vector<32x64xbf16>, vector<8x64xf32> -> vector<8x64xf32>
    %c0_3 = arith.constant 0 : index
    %c0_4 = arith.constant 0 : index
    %3 = vector.load %arg3[%c0_3, %c0_4] : memref<1x64xf32, #tpu.memory_space<vmem>>, vector<1x64xf32>
    %4 = vector.broadcast %3 : vector<1x64xf32> to vector<8x64xf32>
    %5 = arith.addf %2, %4 : vector<8x64xf32>
    %cst_5 = arith.constant 0.000000e+00 : f32
    %6 = vector.broadcast %cst_5 : f32 to vector<8x64xf32>
    %7 = arith.maximumf %5, %6 : vector<8x64xf32>
    %8 = arith.truncf %7 : vector<8x64xf32> to vector<8x64xbf16>
    %c0_6 = arith.constant 0 : index
    %c0_7 = arith.constant 0 : index
    %9 = vector.load %arg4[%c0_6, %c0_7] : memref<64x16xbf16, #tpu.memory_space<vmem>>, vector<64x16xbf16>
    %cst_8 = arith.constant dense<0.000000e+00> : vector<8x16xf32>
    %10 = tpu.matmul %8, %9, %cst_8 {dimension_numbers = #tpu.dot_dimension_numbers<[1], [0], [0], [1], [0, 0, 1, 1], [], []>} : vector<8x64xbf16>, vector<64x16xbf16>, vector<8x16xf32> -> vector<8x16xf32>
    %c0_9 = arith.constant 0 : index
    %c0_10 = arith.constant 0 : index
    %11 = vector.load %arg5[%c0_9, %c0_10] : memref<1x16xf32, #tpu.memory_space<vmem>>, vector<1x16xf32>
    %12 = vector.broadcast %11 : vector<1x16xf32> to vector<8x16xf32>
    %13 = arith.addf %10, %12 : vector<8x16xf32>
    %c0_11 = arith.constant 0 : index
    %c0_12 = arith.constant 0 : index
    %14 = vector.load %arg6[%c0_11, %c0_12] : memref<8x16xf32, #tpu.memory_space<vmem>>, vector<8x16xf32>
    tpu.vector_store %arg6[%c0_11, %c0_12], %13 {strides = array<i32>} : memref<8x16xf32, #tpu.memory_space<vmem>>, vector<8x16xf32>,
    return
  }
  func.func @transform_0(%arg0: i32) -> (i32, i32) {
    %c0_i32 = arith.constant 0 : i32
    %c0_i32_0 = arith.constant 0 : i32
    return %arg0, %c0_i32 : i32, i32
  }
  func.func @transform_1(%arg0: i32) -> (i32, i32) {
    %c0_i32 = arith.constant 0 : i32
    %c0_i32_0 = arith.constant 0 : i32
    %c0_i32_1 = arith.constant 0 : i32
    return %c0_i32, %c0_i32_0 : i32, i32
  }
  func.func @transform_2(%arg0: i32) -> (i32, i32) {
    %c0_i32 = arith.constant 0 : i32
    %c0_i32_0 = arith.constant 0 : i32
    %c0_i32_1 = arith.constant 0 : i32
    return %c0_i32, %c0_i32_0 : i32, i32
  }
  func.func @transform_3(%arg0: i32) -> (i32, i32) {
    %c0_i32 = arith.constant 0 : i32
    %c0_i32_0 = arith.constant 0 : i32
    %c0_i32_1 = arith.constant 0 : i32
    return %c0_i32, %c0_i32_0 : i32, i32
  }
  func.func @transform_4(%arg0: i32) -> (i32, i32) {
    %c0_i32 = arith.constant 0 : i32
    %c0_i32_0 = arith.constant 0 : i32
    %c0_i32_1 = arith.constant 0 : i32
    return %c0_i32, %c0_i32_0 : i32, i32
  }
  func.func @transform_5(%arg0: i32) -> (i32, i32) {
    %c0_i32 = arith.constant 0 : i32
    %c0_i32_0 = arith.constant 0 : i32
    return %arg0, %c0_i32 : i32, i32
  }
}

</mosaic_0001>

<llo_original>
// kernel: mlp_forward.1
$region0: #{mlp_forward.1}
  #allocation0 [shape = 'u32[]', space=smem, size = 0x4, offset = 0x4, fixed_abs, tag = 'smem constant byte address 0x4 - core index']
  #allocation1 [shape = 'u32[144,128]{1,0:T(1,128)}', space=vmem, size = 0x12000, scoped, tag = 'internal scratch']
  %s0 = inlined_call_operand.vmem [shape: bf16[8,32], index: 0, kind: input, shape index: {}]
  %s1 = inlined_call_operand.vmem [shape: bf16[32,64], index: 1, kind: input, shape index: {}]
  %s2 = inlined_call_operand.vmem [shape: f32[1,64], index: 2, kind: input, shape index: {}]
  %s3 = inlined_call_operand.vmem [shape: bf16[64,16], index: 3, kind: input, shape index: {}]
  %s4 = inlined_call_operand.vmem [shape: f32[1,16], index: 4, kind: input, shape index: {}]
  %s5 = inlined_call_operand.hbm [shape: f32[8,16], index: 5, kind: output, shape index: {}]
  %s6 = sld [smem:[#allocation0]]
  $region30: #{mlp_forward.1} parent=0
    _
  %s8 = ssub.s32 1, %s6
  %s9 = scalar_select 0, %s8, %s6
  $region1: #{mlp_forward.1} parent=0
    #allocation2 [shape = 'u8[4096]{0}', space=vmem, size = 0x1000, scoped, tag = 'output window, operand 0, single buffered']
    #allocation3 [shape = 's32[1]{0}', space=sflag, size = 0x4, scoped, tag = 'scoped memory for mlp_forward.1']
    %10 = vsyncpa [#allocation3], 0
    // Predicated region
    $region2: #{mlp_forward.1} parent=1 // pred_check
      _
    $region3: #{mlp_forward.1} parent=1 // pred_check_branch
      %12 = sbr.rel (0) target = $region5
    $region4: #{mlp_forward.1} parent=1 // pred_region
      _
    $region5: #{mlp_forward.1} parent=1 // pred_fallthru
      _
    // Predicated region
    $region6: #{mlp_forward.1} parent=1 // pred_check
      _
    $region7: #{mlp_forward.1} parent=1 // pred_check_branch
      %14 = sbr.rel (0) target = $region9
    $region8: #{mlp_forward.1} parent=1 // pred_region
      _
    $region9: #{mlp_forward.1} parent=1 // pred_fallthru
      _
    // Predicated region
    $region10: #{mlp_forward.1} parent=1 // pred_check
      _
    $region11: #{mlp_forward.1} parent=1 // pred_check_branch
      %16 = sbr.rel (0) target = $region13
    $region12: #{mlp_forward.1} parent=1 // pred_region
      _
    $region13: #{mlp_forward.1} parent=1 // pred_fallthru
      _
    // Predicated region
    $region14: #{mlp_forward.1} parent=1 // pred_check
      _
    $region15: #{mlp_forward.1} parent=1 // pred_check_branch
      %18 = sbr.rel (0) target = $region17
    $region16: #{mlp_forward.1} parent=1 // pred_region
      _
    $region17: #{mlp_forward.1} parent=1 // pred_fallthru
      _
    // Predicated region
    $region18: #{mlp_forward.1} parent=1 // pred_check
      _
    $region19: #{mlp_forward.1} parent=1 // pred_check_branch
      %20 = sbr.rel (0) target = $region21
    $region20: #{mlp_forward.1} parent=1 // pred_region
      _
    $region21: #{mlp_forward.1} parent=1 // pred_fallthru
      _
    %v22 = vld [vmem:[%s0] sm:$0xf]
    %v23 = vld [vmem:[%s1] sm:$0xf]
    %v24 = vld [vmem:[%s1 + $0x4] sm:$0xf]
    %v25 = vld [vmem:[%s1 + $0x8] sm:$0xf]
    %v26 = vld [vmem:[%s1 + $0xc] sm:$0xf]
    %v27 = vld [vmem:[%s2] sm:$0x1]
    %v29 = vlaneseq
    %v30 = vshrl.u32 %v29, 7
    %v31 = vsub.s32 0, %v30
    %v32 = vrot.slane %v27, %v31
    %v38 = vunpack.c.l.b16 %v23
    %v39 = vunpack.c.l.b16 %v24
    %v40 = vunpack.c.l.b16 %v25
    %v41 = vunpack.c.l.b16 %v26
    %v42 = vpack.c.b16 %v39, %v38
    %v43 = vpack.c.b16 %v41, %v40
    %vm46 = vcmask 261120
    %v48 = vsel %vm46, %v22, 0
    %50 = vmatprep.subr.bf16.mxu0 0
    %51 = vmatpush1.bf16.msra.mxu0 %v42
    %52 = vmatprep.subr.bf16.mxu0 0
    %53 = vmatpush1.bf16.msra.mxu0 %v43
    %54 = vmatprep.subr.bf16.mxu0 0
    %55 = vmatpush1.bf16.msra.mxu0 0
    %56 = vmatprep.subr.bf16.mxu0 0
    %57 = vmatpush1.bf16.msra.mxu0 0
    %58 = vmatprep.subr.bf16.mxu0 0
    %59 = vmatpush1.bf16.msra.mxu0 0
    %60 = vmatprep.subr.bf16.mxu0 0
    %61 = vmatpush1.bf16.msra.mxu0 0
    %62 = vmatprep.subr.bf16.mxu0 0
    %63 = vmatpush1.bf16.msra.mxu0 0
    %64 = vmatprep.subr.bf16.mxu0 0
    %65 = vmatpush1.bf16.msra.mxu0 0
    %66 = vmatprep.subr.bf16.mxu0 0
    %67 = vmatpush1.bf16.msra.mxu0 0
    %68 = vmatprep.subr.bf16.mxu0 0
    %69 = vmatpush1.bf16.msra.mxu0 0
    %70 = vmatprep.subr.bf16.mxu0 0
    %71 = vmatpush1.bf16.msra.mxu0 0
    %72 = vmatprep.subr.bf16.mxu0 0
    %73 = vmatpush1.bf16.msra.mxu0 0
    %74 = vmatprep.subr.bf16.mxu0 0
    %75 = vmatpush1.bf16.msra.mxu0 0
    %76 = vmatprep.subr.bf16.mxu0 0
    %77 = vmatpush1.bf16.msra.mxu0 0
    %78 = vmatprep.subr.bf16.mxu0 0
    %79 = vmatpush1.bf16.msra.mxu0 0
    %80 = vmatprep.subr.bf16.mxu0 0
    %81 = vmatpush1.bf16.msra.mxu0 0
    %82 = vmatprep.mubr.bf16.mxu0 0
    %83 = vmatmul.mubr.bf16.gmra.mrb[0].mxu0 %v48
    %v84 = vpop.f32.mrb[0].mxu0
    %v85 = vadd.f32 %v32, %v84
    %v86 = vpop.f32.mrb[0].mxu0
    %v87 = vpop.f32.mrb[0].mxu0
    %v88 = vpop.f32.mrb[0].mxu0
    %89 = vdwg.mxu0
    %v90 = vmax.f32 %v85, 0.0
    %v91 = vpack.c.bf16 %v90, %v90
    %v92 = vld [vmem:[%s3] sm:$0xf]
    %v93 = vld [vmem:[%s3 + $0x4] sm:$0xf]
    %v94 = vld [vmem:[%s3 + $0x8] sm:$0xf]
    %v95 = vld [vmem:[%s3 + $0xc] sm:$0xf]
    %v96 = vld [vmem:[%s3 + $0x10] sm:$0xf]
    %v97 = vld [vmem:[%s3 + $0x14] sm:$0xf]
    %v98 = vld [vmem:[%s3 + $0x18] sm:$0xf]
    %v99 = vld [vmem:[%s3 + $0x1c] sm:$0xf]
    %v100 = vld [vmem:[%s4] sm:$0x1]
    %v102 = vlaneseq
    %v103 = vshrl.u32 %v102, 7
    %v104 = vsub.s32 0, %v103
    %v105 = vrot.slane %v100, %v104
    %v115 = vunpack.c.l.b16 %v92
    %v116 = vunpack.c.l.b16 %v93
    %v117 = vunpack.c.l.b16 %v94
    %v118 = vunpack.c.l.b16 %v95
    %v119 = vunpack.c.l.b16 %v96
    %v120 = vunpack.c.l.b16 %v97
    %v121 = vunpack.c.l.b16 %v98
    %v122 = vunpack.c.l.b16 %v99
    %v123 = vpack.c.b16 %v116, %v115
    %v124 = vpack.c.b16 %v118, %v117
    %v125 = vpack.c.b16 %v120, %v119
    %v126 = vpack.c.b16 %v122, %v121
    %vm131 = vcmask 523264
    %v133 = vsel %vm131, %v91, 0
    %135 = vmatprep.subr.bf16.mxu0 0
    %136 = vmatpush1.bf16.msra.mxu0 %v123
    %137 = vmatprep.subr.bf16.mxu0 0
    %138 = vmatpush1.bf16.msra.mxu0 %v124
    %139 = vmatprep.subr.bf16.mxu0 0
    %140 = vmatpush1.bf16.msra.mxu0 %v125
    %141 = vmatprep.subr.bf16.mxu0 0
    %142 = vmatpush1.bf16.msra.mxu0 %v126
    %143 = vmatprep.subr.bf16.mxu0 0
    %144 = vmatpush1.bf16.msra.mxu0 0
    %145 = vmatprep.subr.bf16.mxu0 0
    %146 = vmatpush1.bf16.msra.mxu0 0
    %147 = vmatprep.subr.bf16.mxu0 0
    %148 = vmatpush1.bf16.msra.mxu0 0
    %149 = vmatprep.subr.bf16.mxu0 0
    %150 = vmatpush1.bf16.msra.mxu0 0
    %151 = vmatprep.subr.bf16.mxu0 0
    %152 = vmatpush1.bf16.msra.mxu0 0
    %153 = vmatprep.subr.bf16.mxu0 0
    %154 = vmatpush1.bf16.msra.mxu0 0
    %155 = vmatprep.subr.bf16.mxu0 0
    %156 = vmatpush1.bf16.msra.mxu0 0
    %157 = vmatprep.subr.bf16.mxu0 0
    %158 = vmatpush1.bf16.msra.mxu0 0
    %159 = vmatprep.subr.bf16.mxu0 0
    %160 = vmatpush1.bf16.msra.mxu0 0
    %161 = vmatprep.subr.bf16.mxu0 0
    %162 = vmatpush1.bf16.msra.mxu0 0
    %163 = vmatprep.subr.bf16.mxu0 0
    %164 = vmatpush1.bf16.msra.mxu0 0
    %165 = vmatprep.subr.bf16.mxu0 0
    %166 = vmatpush1.bf16.msra.mxu0 0
    %167 = vmatprep.mubr.bf16.mxu0 0
    %168 = vmatmul.mubr.bf16.gmra.mrb[0].mxu0 %v133
    %v169 = vpop.f32.mrb[0].mxu0
    %v170 = vadd.f32 %v105, %v169
    %v171 = vpop.f32.mrb[0].mxu0
    %v172 = vpop.f32.mrb[0].mxu0
    %v173 = vpop.f32.mrb[0].mxu0
    %174 = vdwg.mxu0
    %vm175 = vcmask 130048
    %176 = vst.msk [vmem:[#allocation2] sm:$0xff] %vm175, %v170
    // Predicated region
    $region22: #{mlp_forward.1} parent=1 // pred_check
      _
    $region23: #{mlp_forward.1} parent=1 // pred_check_branch
      %178 = sbr.rel (0) target = $region25
    $region24: #{mlp_forward.1} parent=1 // pred_region
      %s180 = ssub.s32 128, 128
      %181 = vsyncadd [#allocation3], %s180
      %s183 = sshll.u32 [#allocation2], 4
      %s184 = int_to_ptr.vmem [resolvable:$true] %s183
      %186 = dma.vmem_to_hbm [thread:$0]  %s184, 128, %s5, [#allocation3]
    $region25: #{mlp_forward.1} parent=1 // pred_fallthru
      _
    // Predicated region
    $region26: #{mlp_forward.1} parent=1 // pred_check
      _
    $region27: #{mlp_forward.1} parent=1 // pred_check_branch
      %188 = sbr.rel (0) target = $region29
    $region28: #{mlp_forward.1} parent=1 // pred_region
      %189 = dma.done [#allocation3], 128
    $region29: #{mlp_forward.1} parent=1 // pred_fallthru
      _
    %190 = vsyncpa [#allocation3], 1

</llo_original>
